<compile_context>
chip_gen: v7x
topology: tpu7x:2x2x1
jax: 0.10.0
libtpu: 0.0.40
codegen_flags: <defaults>
</compile_context>

<pallas_src>
import functools

import jax
import jax.numpy as jnp
from jax.experimental import pallas as pl
from jax.experimental.pallas import tpu as pltpu


def _round_up(a, b):
    return (a + b - 1) // b * b


def _vmem_budget_bytes():
    """Generation-aware VMEM budget (leaves headroom below physical VMEM)."""
    phys = 0
    try:
        info = pltpu.get_tpu_info()
        phys = int(getattr(info, "vmem_capacity_bytes", 0) or 0)
    except Exception:
        phys = 0
    if phys <= 0:
        phys = 64 << 20                                  # conservative default
    if phys <= (64 << 20):                               # v7x: 64 MiB per TC
        return int(min(phys - (12 << 20), 52 << 20))
    return int(min(phys - (24 << 20), 104 << 20))        # v5e / v6e: 128 MiB


def _choose_tiles(n, k, c_pad, budget):
    """Pick tiling so the working set fits the VMEM budget.

    Returns (row_tile, k_tile, k_steps, mask_last_k, c_tile, w_resident).
    """
    f32 = 4
    slack = 2 << 20                         # headroom for compiler-internal scratch

    # K tiling: a single full-K step when the contraction is small enough.
    if k <= 1024:
        base_kt, base_ks = k, 1
    else:
        base_kt, base_ks = 1024, -(-k // 1024)

    row_cap = max(8, _round_up(n, 8))

    def max_row_tile(kt, ks, ct, resident):
        k_span = ks * kt
        w_bytes = 2 * (k_span * c_pad if resident else kt * ct) * f32
        winv_bytes = 2 * 8 * ct * f32
        remaining = budget - slack - w_bytes - winv_bytes
        per_row = (2 * kt + 2 * ct) * f32 + 512    # x + y double buffers + xsq row
        if remaining < 8 * per_row:
            return None
        rt = min(remaining // per_row, 1024, row_cap)
        return int(rt) // 8 * 8

    # Candidate configurations, best first:
    #   1) whole weight resident in VMEM (single HBM fetch for the whole grid),
    #   2) streamed weight with progressively smaller C tiles (parallel C axis),
    #   3) additionally shrink the K tile.
    candidates = [(base_kt, base_ks, c_pad, True)]
    for ct in sorted({min(c_pad, t) for t in (2048, 1024, 512, 256, 128)},
                     reverse=True):
        candidates.append((base_kt, base_ks, ct, False))
    if base_ks > 1:
        for kt in (512, 256, 128):
            candidates.append((kt, -(-k // kt), 128, False))

    for kt, ks, ct, resident in candidates:
        rt = max_row_tile(kt, ks, ct, resident)
        if rt:
            return rt, kt, ks, bool(ks > 1 and k % kt != 0), ct, resident

    # Last resort: minimal tiles (relies on the vmem_limit headroom).
    kt = k if k <= 128 else 128
    ks = -(-k // kt)
    return 8, kt, ks, bool(ks > 1 and k % kt != 0), 128, False


def _linear_head_kernel(x_ref, w_ref, winv_ref, y_ref, xsq_ref, *,
                        k_total, k_tile, k_steps, w_resident, mask_last_k,
                        mxu_dtype):
    """One (row_tile, c_tile, k_tile) step of y = (x @ W) * rsqrt(sum x^2) * (1/||W||)."""
    kk = pl.program_id(2)

    x = x_ref[...]                                          # (row_tile, k_tile) f32
    if mask_last_k:
        # Partial last K tile: zero out-of-range columns so neither the matmul
        # nor the squared norm sees whatever the boundary DMA left in VMEM.
        col = jax.lax.broadcasted_iota(jnp.int32, x.shape, 1)
        x = jnp.where(kk * k_tile + col < k_total, x, 0.0)

    if w_resident and k_steps > 1:
        # Whole W lives in VMEM; slice the current K chunk (aligned start).
        w = w_ref[pl.ds(pl.multiple_of(kk * k_tile, k_tile), k_tile), :]
    else:
        w = w_ref[...]

    if mxu_dtype is not None:
        xd = x.astype(mxu_dtype)
        w = w.astype(mxu_dtype)
    else:
        xd = x

    # MXU partial matmul (f32 accumulation) + per-row partial squared norm.
    y_part = jnp.dot(xd, w, preferred_element_type=jnp.float32)
    xsq_part = jnp.sum(x * x, axis=1, keepdims=True)        # (row_tile, 1) f32

    @pl.when(kk == 0)
    def _():
        # First K step: write (no zero-init read-modify-write of the tile).
        y_ref[...] = y_part
        xsq_ref[...] = xsq_part

    @pl.when(kk > 0)
    def _():
        y_ref[...] += y_part
        xsq_ref[...] += xsq_part

    @pl.when(kk == k_steps - 1)
    def _():
        # rsqrt goes to the EUP (its own bundle slot) -> no VPU divide chain.
        inv_x = jax.lax.rsqrt(xsq_ref[...])                 # (row_tile, 1)
        y_ref[...] = y_ref[...] * inv_x * winv_ref[...]     # lane-dense store


def linear_head(x, weight, *, mxu_dtype=None):
    """Pallas implementation of LinearHead.forward.

    x:      (N, K) float32
    weight: (K, C) float32
    mxu_dtype: optional reduced MXU precision (e.g. jnp.bfloat16); None (default)
        keeps the matmul operands in f32 to match the PyTorch reference closely.
    returns (N, C) float32, or (N,) if C == 1 (matches torch squeeze(-1)).
    """
    x = x.astype(jnp.float32)
    weight = weight.astype(jnp.float32)
    n, k = x.shape
    k2, c = weight.shape
    assert k == k2, "x and weight contraction dims must match"

    # Grid-invariant reciprocal column norms: computed once, outside the kernel.
    w_inv = jax.lax.rsqrt(jnp.sum(weight * weight, axis=0, keepdims=True))  # (1, C)

    c_pad = _round_up(c, 128)                      # lane-dense output slab
    budget = _vmem_budget_bytes()
    (row_tile, k_tile, k_steps, mask_last_k,
     c_tile, w_resident) = _choose_tiles(n, k, c_pad, budget)
    k_span = k_steps * k_tile

    # Only the small operands get padded/copied; x streams from HBM as-is.
    w_p = jnp.pad(weight, ((0, k_span - k), (0, c_pad - c)))
    # Pad the *reciprocal* norms with zeros so padded columns stay finite (0).
    winv_p = jnp.pad(w_inv, ((0, 0), (0, c_pad - c)))
    if mxu_dtype is not None:
        w_p = w_p.astype(mxu_dtype)                # also halves W's HBM stream

    grid = (pl.cdiv(n, row_tile), pl.cdiv(c_pad, c_tile), k_steps)

    if w_resident:
        # Constant block index -> W is DMA'd from HBM exactly once.
        w_spec = pl.BlockSpec((k_span, c_pad), lambda i, j, kk: (0, 0))
    else:
        w_spec = pl.BlockSpec((k_tile, c_tile), lambda i, j, kk: (kk, j))

    kernel = functools.partial(
        _linear_head_kernel,
        k_total=k, k_tile=k_tile, k_steps=k_steps,
        w_resident=w_resident, mask_last_k=mask_last_k, mxu_dtype=mxu_dtype)

    out = pl.pallas_call(
        kernel,
        out_shape=jax.ShapeDtypeStruct((n, c_pad), jnp.float32),
        grid_spec=pltpu.PrefetchScalarGridSpec(
            num_scalar_prefetch=0,
            grid=grid,
            in_specs=[
                pl.BlockSpec((row_tile, k_tile), lambda i, j, kk: (i, kk)),
                w_spec,
                pl.BlockSpec((1, c_tile), lambda i, j, kk: (0, j)),
            ],
            out_specs=pl.BlockSpec((row_tile, c_tile), lambda i, j, kk: (i, j)),
            scratch_shapes=[
                pltpu.VMEM((row_tile, 1), jnp.float32),   # per-row sum(x*x)
            ],
        ),
        compiler_params=pltpu.CompilerParams(
            dimension_semantics=("parallel", "parallel", "arbitrary"),
            vmem_limit_bytes=int(budget),
        ),
    )(x, w_p, winv_p)

    out = out[:, :c]
    if c == 1:
        out = jnp.squeeze(out, axis=-1)
    return out


def make_orthogonal_weight(key, in_features, out_classes):
    """Deterministic stand-in for nn.init.orthogonal_ on a (K, C) matrix."""
    # TODO(synk): init-time nn.init.orthogonal_ has no Pallas equivalent; this
    # QR-based construction only builds test data and is not part of forward.
    rows, cols = in_features, out_classes
    flat = jax.random.normal(key, (max(rows, cols), min(rows, cols)), jnp.float32)
    q, r = jnp.linalg.qr(flat)
    q = q * jnp.sign(jnp.diagonal(r))[None, :]
    if rows < cols:
        q = q.T
    return q[:rows, :cols].astype(jnp.float32)


def linear_head_reference(x, weight):
    """Pure-JAX reference mirroring the PyTorch forward exactly."""
    y = x @ weight
    w = jnp.linalg.norm(weight, axis=0, keepdims=True)
    xn = jnp.linalg.norm(x, axis=1, keepdims=True)
    y = y / (xn * w)
    if y.shape[-1] == 1:
        y = jnp.squeeze(y, axis=-1)
    return y


if __name__ == "__main__":
    key = jax.random.PRNGKey(0)
    k_x, k_w, k_w1 = jax.random.split(key, 3)

    batch, in_features, out_classes = 8, 32, 16

    x = jax.random.normal(k_x, (batch, in_features), jnp.float32)
    weight = make_orthogonal_weight(k_w, in_features, out_classes)

    y = jax.block_until_ready(linear_head(x, weight))
    y_ref = linear_head_reference(x, weight)
    assert y.shape == y_ref.shape
    assert jnp.allclose(y, y_ref, atol=1e-5, rtol=1e-5), "mismatch vs reference (C=16)"

    # C == 1 head: exercises the lane-padded output and the squeeze(-1) path.
    weight1 = make_orthogonal_weight(k_w1, in_features, 1)
    y1 = jax.block_until_ready(linear_head(x, weight1))
    y1_ref = linear_head_reference(x, weight1)
    assert y1.shape == y1_ref.shape == (batch,)
    assert jnp.allclose(y1, y1_ref, atol=1e-5, rtol=1e-5), "mismatch vs reference (C=1)"

    print("KERNEL_OK")
</pallas_src>

<mosaic_0001>
module attributes {stable_mosaic.version = 11 : i64} {
  func.func @_linear_head_kernel(%arg0: i32, %arg1: i32, %arg2: i32, %arg3: memref<8x32xf32, #tpu.memory_space<vmem>>, %arg4: memref<32x128xf32, #tpu.memory_space<vmem>>, %arg5: memref<1x128xf32, #tpu.memory_space<vmem>>, %arg6: memref<8x128xf32, #tpu.memory_space<vmem>>, %arg7: memref<8x1xf32, #tpu.memory_space<vmem>>) attributes {dimension_semantics = [#tpu.dimension_semantics<parallel>, #tpu.dimension_semantics<parallel>, #tpu.dimension_semantics<arbitrary>], iteration_bounds = array<i64: 1, 1, 1>, scalar_prefetch = 0 : i64, scratch_operands = 1 : i64, tpu.core_type = #tpu.core_type<tc>, window_params = [{transform_indices = @transform_0, window_bounds = array<i64: 8, 32>}, {pipeline_mode = #tpu.pipeline_mode<synchronous>, transform_indices = @transform_1, window_bounds = array<i64: 32, 128>}, {transform_indices = @transform_2, window_bounds = array<i64: 1, 128>}, {transform_indices = @transform_3, window_bounds = array<i64: 8, 128>}]} {
    %c0 = arith.constant 0 : index
    %c0_0 = arith.constant 0 : index
    %0 = vector.load %arg3[%c0, %c0_0] : memref<8x32xf32, #tpu.memory_space<vmem>>, vector<8x32xf32>
    %c0_1 = arith.constant 0 : index
    %c0_2 = arith.constant 0 : index
    %1 = vector.load %arg4[%c0_1, %c0_2] : memref<32x128xf32, #tpu.memory_space<vmem>>, vector<32x128xf32>
    %cst = arith.constant dense<0.000000e+00> : vector<8x128xf32>
    %2 = tpu.matmul %0, %1, %cst {dimension_numbers = #tpu.dot_dimension_numbers<[1], [0], [0], [1], [0, 0, 1, 1], [], []>} : vector<8x32xf32>, vector<32x128xf32>, vector<8x128xf32> -> vector<8x128xf32>
    %3 = arith.mulf %0, %0 : vector<8x32xf32>
    %cst_3 = arith.constant dense<0.000000e+00> : vector<8xf32>
    %4 = vector.multi_reduction <add>, %3, %cst_3 [1] : vector<8x32xf32> to vector<8xf32>
    %5 = vector.shape_cast %4 : vector<8xf32> to vector<8x1xf32>
    %c0_i32 = arith.constant 0 : i32
    %6 = arith.cmpi eq, %arg2, %c0_i32 : i32
    %7 = arith.extui %6 : i1 to i32
    %c0_i32_4 = arith.constant 0 : i32
    %8 = arith.cmpi ne, %7, %c0_i32_4 : i32
    scf.if %8 {
      %c0_9 = arith.constant 0 : index
      %c0_10 = arith.constant 0 : index
      %15 = vector.load %arg6[%c0_9, %c0_10] : memref<8x128xf32, #tpu.memory_space<vmem>>, vector<8x128xf32>
      tpu.vector_store %arg6[%c0_9, %c0_10], %2 {strides = array<i32>} : memref<8x128xf32, #tpu.memory_space<vmem>>, vector<8x128xf32>,
      %c0_11 = arith.constant 0 : index
      %c0_12 = arith.constant 0 : index
      %16 = vector.load %arg7[%c0_11, %c0_12] : memref<8x1xf32, #tpu.memory_space<vmem>>, vector<8x1xf32>
      tpu.vector_store %arg7[%c0_11, %c0_12], %5 {strides = array<i32>} : memref<8x1xf32, #tpu.memory_space<vmem>>, vector<8x1xf32>,
    } else {
    }
    %c0_i32_5 = arith.constant 0 : i32
    %9 = arith.cmpi sgt, %arg2, %c0_i32_5 : i32
    %10 = arith.extui %9 : i1 to i32
    %c0_i32_6 = arith.constant 0 : i32
    %11 = arith.cmpi ne, %10, %c0_i32_6 : i32
    scf.if %11 {
      %c0_9 = arith.constant 0 : index
      %c0_10 = arith.constant 0 : index
      %15 = vector.load %arg6[%c0_9, %c0_10] : memref<8x128xf32, #tpu.memory_space<vmem>>, vector<8x128xf32>
      %16 = arith.addf %15, %2 : vector<8x128xf32>
      %c0_11 = arith.constant 0 : index
      %c0_12 = arith.constant 0 : index
      %17 = vector.load %arg6[%c0_11, %c0_12] : memref<8x128xf32, #tpu.memory_space<vmem>>, vector<8x128xf32>
      tpu.vector_store %arg6[%c0_11, %c0_12], %16 {strides = array<i32>} : memref<8x128xf32, #tpu.memory_space<vmem>>, vector<8x128xf32>,
      %c0_13 = arith.constant 0 : index
      %c0_14 = arith.constant 0 : index
      %18 = vector.load %arg7[%c0_13, %c0_14] : memref<8x1xf32, #tpu.memory_space<vmem>>, vector<8x1xf32>
      %19 = arith.addf %18, %5 : vector<8x1xf32>
      %c0_15 = arith.constant 0 : index
      %c0_16 = arith.constant 0 : index
      %20 = vector.load %arg7[%c0_15, %c0_16] : memref<8x1xf32, #tpu.memory_space<vmem>>, vector<8x1xf32>
      tpu.vector_store %arg7[%c0_15, %c0_16], %19 {strides = array<i32>} : memref<8x1xf32, #tpu.memory_space<vmem>>, vector<8x1xf32>,
    } else {
    }
    %c0_i32_7 = arith.constant 0 : i32
    %12 = arith.cmpi eq, %arg2, %c0_i32_7 : i32
    %13 = arith.extui %12 : i1 to i32
    %c0_i32_8 = arith.constant 0 : i32
    %14 = arith.cmpi ne, %13, %c0_i32_8 : i32
    scf.if %14 {
      %c0_9 = arith.constant 0 : index
      %c0_10 = arith.constant 0 : index
      %15 = vector.load %arg7[%c0_9, %c0_10] : memref<8x1xf32, #tpu.memory_space<vmem>>, vector<8x1xf32>
      %16 = math.rsqrt %15 : vector<8x1xf32>
      %c0_11 = arith.constant 0 : index
      %c0_12 = arith.constant 0 : index
      %17 = vector.load %arg6[%c0_11, %c0_12] : memref<8x128xf32, #tpu.memory_space<vmem>>, vector<8x128xf32>
      %18 = vector.broadcast %16 : vector<8x1xf32> to vector<8x128xf32>
      %19 = arith.mulf %17, %18 : vector<8x128xf32>
      %c0_13 = arith.constant 0 : index
      %c0_14 = arith.constant 0 : index
      %20 = vector.load %arg5[%c0_13, %c0_14] : memref<1x128xf32, #tpu.memory_space<vmem>>, vector<1x128xf32>
      %21 = vector.broadcast %20 : vector<1x128xf32> to vector<8x128xf32>
      %22 = arith.mulf %19, %21 : vector<8x128xf32>
      %c0_15 = arith.constant 0 : index
      %c0_16 = arith.constant 0 : index
      %23 = vector.load %arg6[%c0_15, %c0_16] : memref<8x128xf32, #tpu.memory_space<vmem>>, vector<8x128xf32>
      tpu.vector_store %arg6[%c0_15, %c0_16], %22 {strides = array<i32>} : memref<8x128xf32, #tpu.memory_space<vmem>>, vector<8x128xf32>,
    } else {
    }
    return
  }
  func.func @transform_0(%arg0: i32, %arg1: i32, %arg2: i32) -> (i32, i32) {
    %c0_i32 = arith.constant 0 : i32
    return %arg0, %arg2 : i32, i32
  }
  func.func @transform_1(%arg0: i32, %arg1: i32, %arg2: i32) -> (i32, i32) {
    %c0_i32 = arith.constant 0 : i32
    %c0_i32_0 = arith.constant 0 : i32
    %c0_i32_1 = arith.constant 0 : i32
    return %c0_i32, %c0_i32_0 : i32, i32
  }
  func.func @transform_2(%arg0: i32, %arg1: i32, %arg2: i32) -> (i32, i32) {
    %c0_i32 = arith.constant 0 : i32
    %c0_i32_0 = arith.constant 0 : i32
    return %c0_i32, %arg1 : i32, i32
  }
  func.func @transform_3(%arg0: i32, %arg1: i32, %arg2: i32) -> (i32, i32) {
    %c0_i32 = arith.constant 0 : i32
    return %arg0, %arg1 : i32, i32
  }
}

</mosaic_0001>

<llo_original>
// kernel: tpu_custom_call.1
$region0: #{tpu_custom_call.1}
  #allocation0 [shape = 'u32[]', space=smem, size = 0x4, offset = 0x4, fixed_abs, tag = 'smem constant byte address 0x4 - core index']
  #allocation1 [shape = 'u32[144,128]{1,0:T(1,128)}', space=vmem, size = 0x12000, scoped, tag = 'internal scratch']
  #allocation2 [shape = 'f32[8,1]{1,0:T(8,128)}', space=vmem, size = 0x1000, scoped, tag = 'scratch operand']
  %s0 = inlined_call_operand.hbm [shape: f32[8,32], index: 0, kind: input, shape index: {}]
  %s1 = inlined_call_operand.hbm [shape: f32[32,128], index: 1, kind: input, shape index: {}]
  %s2 = inlined_call_operand.vmem [shape: f32[1,128], index: 2, kind: input, shape index: {}]
  %s3 = inlined_call_operand.hbm [shape: f32[8,128], index: 3, kind: output, shape index: {}]
  %s4 = sld [smem:[#allocation0]]
  $region42: #{tpu_custom_call.1} parent=0
    _
  %s6 = ssub.s32 1, %s4
  %s7 = scalar_select 0, %s6, %s4
  $region1: #{tpu_custom_call.1} parent=0
    #allocation3 [shape = 'u8[4096]{0}', space=vmem, size = 0x1000, scoped, tag = 'input window, operand 0, single buffered']
    #allocation4 [shape = 's32[1]{0}', space=sflag, size = 0x4, scoped, tag = 'scoped memory for tpu_custom_call.1']
    #allocation5 [shape = 's32[1]{0}', space=sflag, size = 0x4, scoped, tag = 'scoped memory for tpu_custom_call.1']
    #allocation6 [shape = 'u8[16384]{0}', space=vmem, size = 0x4000, scoped, tag = 'input window, operand 1, single buffered']
    #allocation7 [shape = 's32[1]{0}', space=sflag, size = 0x4, scoped, tag = 'scoped memory for tpu_custom_call.1']
    #allocation8 [shape = 'u8[4096]{0}', space=vmem, size = 0x1000, scoped, tag = 'output window, operand 0, single buffered']
    %8 = vsyncpa [#allocation4], 0
    %9 = vsyncpa [#allocation7], 0
    %10 = vsyncpa [#allocation5], 0
    // Predicated region
    $region2: #{tpu_custom_call.1} parent=1 // pred_check
      _
    $region3: #{tpu_custom_call.1} parent=1 // pred_check_branch
      %12 = sbr.rel (0) target = $region5
    $region4: #{tpu_custom_call.1} parent=1 // pred_region
      %s14 = ssub.s32 128, 128
      %15 = vsyncadd [#allocation4], %s14
      %s17 = sshll.u32 [#allocation3], 4
      %s18 = int_to_ptr.vmem [resolvable:$true] %s17
      %20 = dma.hbm_to_vmem [thread:$0]  %s0, 128, %s18, [#allocation4]
    $region5: #{tpu_custom_call.1} parent=1 // pred_fallthru
      _
    // Predicated region
    $region6: #{tpu_custom_call.1} parent=1 // pred_check
      _
    $region7: #{tpu_custom_call.1} parent=1 // pred_check_branch
      %22 = sbr.rel (0) target = $region9
    $region8: #{tpu_custom_call.1} parent=1 // pred_region
      %s24 = ssub.s32 512, 512
      %25 = vsyncadd [#allocation7], %s24
      %s26 = sshll.u32 [#allocation6], 4
      %s27 = int_to_ptr.vmem [resolvable:$true] %s26
      %32 = dma.hbm_to_vmem [thread:$0]  %s1, 512, %s27, [#allocation7], 128, 128, 8
    $region9: #{tpu_custom_call.1} parent=1 // pred_fallthru
      _
    // Predicated region
    $region10: #{tpu_custom_call.1} parent=1 // pred_check
      _
    $region11: #{tpu_custom_call.1} parent=1 // pred_check_branch
      %34 = sbr.rel (0) target = $region13
    $region12: #{tpu_custom_call.1} parent=1 // pred_region
      _
    $region13: #{tpu_custom_call.1} parent=1 // pred_fallthru
      _
    // Predicated region
    $region14: #{tpu_custom_call.1} parent=1 // pred_check
      _
    $region15: #{tpu_custom_call.1} parent=1 // pred_check_branch
      %36 = sbr.rel (0) target = $region17
    $region16: #{tpu_custom_call.1} parent=1 // pred_region
      %37 = dma.done [#allocation4], 128
    $region17: #{tpu_custom_call.1} parent=1 // pred_fallthru
      _
    // Predicated region
    $region18: #{tpu_custom_call.1} parent=1 // pred_check
      _
    $region19: #{tpu_custom_call.1} parent=1 // pred_check_branch
      %39 = sbr.rel (0) target = $region21
    $region20: #{tpu_custom_call.1} parent=1 // pred_region
      %40 = dma.done [#allocation7], 512
    $region21: #{tpu_custom_call.1} parent=1 // pred_fallthru
      _
    %v41 = vld [vmem:[#allocation3] sm:$0xff]
    %v42 = vld [vmem:[#allocation6] sm:$0xff]
    %v43 = vld [vmem:[#allocation6 + $0x8] sm:$0xff]
    %v44 = vld [vmem:[#allocation6 + $0x10] sm:$0xff]
    %v45 = vld [vmem:[#allocation6 + $0x18] sm:$0xff]
    %vm46 = vcmask 261120
    %v48 = vsel %vm46, %v41, 0
    %50 = vmatprep.subr.mxu0 0.0
    %51 = vmatpush1.msra.mxu0 %v42
    %52 = vmatprep.subr.mxu0 0.0
    %53 = vmatpush1.msra.mxu0 %v43
    %54 = vmatprep.subr.mxu0 0.0
    %55 = vmatpush1.msra.mxu0 %v44
    %56 = vmatprep.subr.mxu0 0.0
    %57 = vmatpush1.msra.mxu0 %v45
    %58 = vmatprep.subr.mxu0 0.0
    %59 = vmatpush1.msra.mxu0 0.0
    %60 = vmatprep.subr.mxu0 0.0
    %61 = vmatpush1.msra.mxu0 0.0
    %62 = vmatprep.subr.mxu0 0.0
    %63 = vmatpush1.msra.mxu0 0.0
    %64 = vmatprep.subr.mxu0 0.0
    %65 = vmatpush1.msra.mxu0 0.0
    %66 = vmatprep.subr.mxu0 0.0
    %67 = vmatpush1.msra.mxu0 0.0
    %68 = vmatprep.subr.mxu0 0.0
    %69 = vmatpush1.msra.mxu0 0.0
    %70 = vmatprep.subr.mxu0 0.0
    %71 = vmatpush1.msra.mxu0 0.0
    %72 = vmatprep.subr.mxu0 0.0
    %73 = vmatpush1.msra.mxu0 0.0
    %74 = vmatprep.subr.mxu0 0.0
    %75 = vmatpush1.msra.mxu0 0.0
    %76 = vmatprep.subr.mxu0 0.0
    %77 = vmatpush1.msra.mxu0 0.0
    %78 = vmatprep.subr.mxu0 0.0
    %79 = vmatpush1.msra.mxu0 0.0
    %80 = vmatprep.subr.mxu0 0.0
    %81 = vmatpush1.msra.mxu0 0.0
    %82 = vmatprep.subr.mxu0 0.0
    %83 = vmatpush1.msra.mxu0 0.0
    %84 = vmatprep.subr.mxu0 0.0
    %85 = vmatpush1.msra.mxu0 0.0
    %86 = vmatprep.subr.mxu0 0.0
    %87 = vmatpush1.msra.mxu0 0.0
    %88 = vmatprep.subr.mxu0 0.0
    %89 = vmatpush1.msra.mxu0 0.0
    %90 = vmatprep.subr.mxu0 0.0
    %91 = vmatpush1.msra.mxu0 0.0
    %92 = vmatprep.subr.mxu0 0.0
    %93 = vmatpush1.msra.mxu0 0.0
    %94 = vmatprep.subr.mxu0 0.0
    %95 = vmatpush1.msra.mxu0 0.0
    %96 = vmatprep.subr.mxu0 0.0
    %97 = vmatpush1.msra.mxu0 0.0
    %98 = vmatprep.subr.mxu0 0.0
    %99 = vmatpush1.msra.mxu0 0.0
    %100 = vmatprep.subr.mxu0 0.0
    %101 = vmatpush1.msra.mxu0 0.0
    %102 = vmatprep.subr.mxu0 0.0
    %103 = vmatpush1.msra.mxu0 0.0
    %104 = vmatprep.subr.mxu0 0.0
    %105 = vmatpush1.msra.mxu0 0.0
    %106 = vmatprep.subr.mxu0 0.0
    %107 = vmatpush1.msra.mxu0 0.0
    %108 = vmatprep.subr.mxu0 0.0
    %109 = vmatpush1.msra.mxu0 0.0
    %110 = vmatprep.subr.mxu0 0.0
    %111 = vmatpush1.msra.mxu0 0.0
    %112 = vmatprep.subr.mxu0 0.0
    %113 = vmatpush1.msra.mxu0 0.0
    %114 = vmatprep.mubr.f32.mxu0 0.0
    %115 = vmatmul.mubr.f32.gmra.mrb[0].mxu0 %v48
    %v116 = vpop.f32.mrb[0].mxu0
    %v117 = vadd.f32 0.0, %v116
    %v118 = vpop.f32.mrb[0].mxu0
    %119 = vdwg.mxu0
    %v120 = vmul.f32 %v41, %v41
    %v121 = vsel %vm46, %v120, 0.0
    %122 = vadd.xlane.f32.xlu0 %v121
    %v123 = vpop.xlane.xlu0 %122
    %p124 = scmp.eq.s32.totalorder 0, 0
    // Predicated region
    $region22: #{tpu_custom_call.1} parent=1 // pred_check
      %p125 = pneg %p124
    $region23: #{tpu_custom_call.1} parent=1 // pred_check_branch
      %127 = sbr.rel (%p125) target = $region25
    $region24: #{tpu_custom_call.1} parent=1 // pred_region
      %128 = vst [vmem:[#allocation8] sm:$0xff] %v117
      %vm129 = vcmask 7168
      %130 = vst.msk [vmem:[#allocation2] sm:$0xff] %vm129, %v123
    $region25: #{tpu_custom_call.1} parent=1 // pred_fallthru
      _
    %p131 = scmp.gt.s32.totalorder 0, 0
    // Predicated region
    $region26: #{tpu_custom_call.1} parent=1 // pred_check
      %p132 = pneg %p131
    $region27: #{tpu_custom_call.1} parent=1 // pred_check_branch
      %134 = sbr.rel (%p132) target = $region29
    $region28: #{tpu_custom_call.1} parent=1 // pred_region
      %v135 = vld [vmem:[#allocation8] sm:$0xff]
      %v136 = vadd.f32 %v135, %v117
      %137 = vst [vmem:[#allocation8] sm:$0xff] %v136
      %v138 = vld [vmem:[#allocation2] sm:$0xff]
      %v139 = vadd.f32 %v138, %v123
      %vm140 = vcmask 7168
      %141 = vst.msk [vmem:[#allocation2] sm:$0xff] %vm140, %v139
    $region29: #{tpu_custom_call.1} parent=1 // pred_fallthru
      _
    // Predicated region
    $region30: #{tpu_custom_call.1} parent=1 // pred_check
      %p142 = pneg %p124
    $region31: #{tpu_custom_call.1} parent=1 // pred_check_branch
      %144 = sbr.rel (%p142) target = $region33
    $region32: #{tpu_custom_call.1} parent=1 // pred_region
      %v145 = vld [vmem:[#allocation2] sm:$0xff]
      %v146 = vrsqrt.pop %v145
      %v147 = vld [vmem:[#allocation8] sm:$0xff]
      %149 = vset.pattern.permute.xlu0 0
      %150 = vperm.xlu0 %149, %v146
      %v151 = vpop.permute.xlu0 %150
      %v153 = vmul.f32 %v147, %v151
      %v154 = vld [vmem:[%s2] sm:$0x1]
      %v156 = vlaneseq
      %v157 = vshrl.u32 %v156, 7
      %v158 = vsub.s32 0, %v157
      %v159 = vrot.slane %v154, %v158
      %v161 = vmul.f32 %v153, %v159
      %162 = vst [vmem:[#allocation8] sm:$0xff] %v161
    $region33: #{tpu_custom_call.1} parent=1 // pred_fallthru
      _
    // Predicated region
    $region34: #{tpu_custom_call.1} parent=1 // pred_check
      _
    $region35: #{tpu_custom_call.1} parent=1 // pred_check_branch
      %164 = sbr.rel (0) target = $region37
    $region36: #{tpu_custom_call.1} parent=1 // pred_region
      %s166 = ssub.s32 128, 128
      %167 = vsyncadd [#allocation5], %s166
      %s169 = sshll.u32 [#allocation8], 4
      %s170 = int_to_ptr.vmem [resolvable:$true] %s169
      %172 = dma.vmem_to_hbm [thread:$0]  %s170, 128, %s3, [#allocation5]
    $region37: #{tpu_custom_call.1} parent=1 // pred_fallthru
      _
    // Predicated region
    $region38: #{tpu_custom_call.1} parent=1 // pred_check
      _
    $region39: #{tpu_custom_call.1} parent=1 // pred_check_branch
      %174 = sbr.rel (0) target = $region41
    $region40: #{tpu_custom_call.1} parent=1 // pred_region
      %175 = dma.done [#allocation5], 128
    $region41: #{tpu_custom_call.1} parent=1 // pred_fallthru
      _
    %176 = vsyncpa [#allocation4], 1
    %177 = vsyncpa [#allocation7], 1
    %178 = vsyncpa [#allocation5], 1

</llo_original>
